<compile_context>
chip_gen: v7x
topology: tpu7x:2x2x1
jax: 0.10.0
libtpu: 0.0.40
codegen_flags: <defaults>
</compile_context>

<pallas_src>
import jax
import jax.numpy as jnp
from jax.experimental import pallas as pl
from jax.experimental.pallas import tpu as pltpu

BN_EPS = 1e-5  # PyTorch BatchNorm2d default


# ----------------------------- Pallas kernels -------------------------------

def _conv_bn_relu_pool_kernel(patches_ref, w_ref, b_ref, out_ref):
    """Fused conv (im2col matmul, BN folded) + ReLU + 2x2 avg-pool.

    patches_ref: [4, TM, K]  axis 0 = 2x2 pooling-window sub-pixel (dh*2+dw),
                             axis 1 = tile of flattened (n, hp, wp) output positions,
                             K = C_in * 3 * 3.
    w_ref:       [K, C]      conv weight with the BN scale folded in (f32 or bf16).
    b_ref:       [1, C]      folded BN shift (f32).
    out_ref:     [TM, C]     pooled activations (f32).
    """
    w = w_ref[...]
    b = b_ref[...]
    acc = jnp.maximum(
        jnp.dot(patches_ref[0], w, preferred_element_type=jnp.float32) + b, 0.0)
    for j in range(1, 4):  # static unroll over the 2x2 pooling window
        acc += jnp.maximum(
            jnp.dot(patches_ref[j], w, preferred_element_type=jnp.float32) + b, 0.0)
    out_ref[...] = acc * 0.25


def _linear_kernel(x_ref, w_ref, b_ref, out_ref):
    """logits = x @ W + b.  x: [N, F], w: [F, n_classes], b: [1, n_classes]."""
    out_ref[...] = (jnp.dot(x_ref[...], w_ref[...],
                            preferred_element_type=jnp.float32) + b_ref[...])


# ------------------------------- glue / wrapper ------------------------------

def _im2col_grouped(x, Ho, Wo):
    """x: [N, C, H, W] -> patches [4, N*Hp*Wp, C*9] for conv k=3, s=2, p=1 followed by
    AvgPool2d(2).  Axis 0 = pooling-window sub-pixel j = dh*2+dw; axis 1 = (n, hp, wp)
    row-major; axis 2 = c*9 + kh*3 + kw (matches conv_w.reshape(C, C*9))."""
    N, C, _, _ = x.shape
    Hp, Wp = Ho // 2, Wo // 2
    xp = jnp.pad(x, ((0, 0), (0, 0), (1, 1), (1, 1)))
    taps = []
    for kh in range(3):
        for kw in range(3):
            taps.append(xp[:, :, kh:kh + 2 * Ho:2, kw:kw + 2 * Wo:2])  # [N, C, Ho, Wo]
    p = jnp.stack(taps, axis=2)                          # [N, C, 9, Ho, Wo]
    p = p[:, :, :, :2 * Hp, :2 * Wp]                     # AvgPool2d floor: drop odd tail
    p = p.reshape(N, C, 9, Hp, 2, Wp, 2)                 # [N, C, 9, hp, dh, wp, dw]
    p = p.transpose(4, 6, 0, 3, 5, 1, 2)                 # [dh, dw, N, hp, wp, C, 9]
    return p.reshape(4, N * Hp * Wp, C * 9)


def _pick_tile_m(M, max_tile=256, align=16):
    """Largest multiple-of-`align` tile that divides M, is <= max_tile, and leaves
    >= 2 grid steps (so both v7x TensorCores get work).  Falls back to one full block."""
    cands = [t for t in range(align, min(M - 1, max_tile) + 1, align)
             if M % t == 0 and M // t >= 2]
    return max(cands) if cands else M


def exit_block_forward(x, params, n_classes, *, use_bf16=True):
    """x: [N, C, H, W] float32 (NCHW, like PyTorch). Returns logits [N, n_classes]."""
    N, C, H, W = x.shape
    Ho = (H + 2 - 3) // 2 + 1
    Wo = (W + 2 - 3) // 2 + 1
    Hp, Wp = Ho // 2, Wo // 2
    K = C * 9
    P = Hp * Wp
    F = C * P
    M = N * P

    # ---- host-side (one-time) parameter prep --------------------------------
    # Fold eval-mode BN into the conv weight + bias.
    scale = params["bn_gamma"] / jnp.sqrt(params["bn_var"] + BN_EPS)      # [C]
    shift = params["bn_beta"] - params["bn_mean"] * scale                 # [C]
    wc = params["conv_w"].reshape(C, K).T * scale[None, :]                # [K, C]
    bc = shift.reshape(1, C).astype(jnp.float32)                          # [1, C]

    # Permute the FC weight so it consumes the pooled features in their natural
    # (hp, wp, c) order -> no transpose / HBM round trip between the two kernels.
    wl = (params["fc_w"].reshape(n_classes, C, Hp, Wp)
          .transpose(2, 3, 1, 0).reshape(F, n_classes))                   # [F, n_classes]
    bl = params["fc_b"].reshape(1, n_classes).astype(jnp.float32)

    patches = _im2col_grouped(x, Ho, Wo)                                  # [4, M, K]

    mxu_dtype = jnp.bfloat16 if use_bf16 else jnp.float32
    patches = patches.astype(mxu_dtype)
    wc = wc.astype(mxu_dtype)
    wl = wl.astype(mxu_dtype)

    TM = _pick_tile_m(M)
    grid_m = M // TM

    # Kernel A: conv + folded-BN + ReLU + 2x2 avg-pool over all samples at once,
    # tiled along the flattened (n, hp, wp) dimension.
    pooled = pl.pallas_call(
        _conv_bn_relu_pool_kernel,
        out_shape=jax.ShapeDtypeStruct((M, C), jnp.float32),
        grid_spec=pltpu.PrefetchScalarGridSpec(
            num_scalar_prefetch=0,
            grid=(grid_m,),
            in_specs=[
                pl.BlockSpec((4, TM, K), lambda i: (0, i, 0)),
                pl.BlockSpec((K, C), lambda i: (0, 0)),
                pl.BlockSpec((1, C), lambda i: (0, 0)),
            ],
            out_specs=pl.BlockSpec((TM, C), lambda i: (i, 0)),
        ),
        compiler_params=pltpu.CompilerParams(dimension_semantics=("parallel",)),
    )(patches, wc, bc)

    # Contiguous (free) reshape: rows are already (n, hp, wp)-major with c minor,
    # which matches the permuted FC weight above -> no XLA transpose, no extra HBM pass.
    feats = pooled.reshape(N, F).astype(mxu_dtype)

    # Kernel B: Linear classifier.
    logits = pl.pallas_call(
        _linear_kernel,
        out_shape=jax.ShapeDtypeStruct((N, n_classes), jnp.float32),
        grid_spec=pltpu.PrefetchScalarGridSpec(
            num_scalar_prefetch=0,
            grid=(1,),
            in_specs=[
                pl.BlockSpec((N, F), lambda i: (0, 0)),
                pl.BlockSpec((F, n_classes), lambda i: (0, 0)),
                pl.BlockSpec((1, n_classes), lambda i: (0, 0)),
            ],
            out_specs=pl.BlockSpec((N, n_classes), lambda i: (0, 0)),
        ),
        compiler_params=pltpu.CompilerParams(dimension_semantics=("arbitrary",)),
    )(feats, wl, bl)
    return logits


# ------------------------------ pure-JAX reference ---------------------------

def reference_forward(x, params, n_classes):
    y = jax.lax.conv_general_dilated(
        x, params["conv_w"], window_strides=(2, 2), padding=((1, 1), (1, 1)),
        dimension_numbers=("NCHW", "OIHW", "NCHW"))
    scale = params["bn_gamma"] / jnp.sqrt(params["bn_var"] + BN_EPS)
    shift = params["bn_beta"] - params["bn_mean"] * scale
    y = jnp.maximum(y * scale[None, :, None, None] + shift[None, :, None, None], 0.0)
    N, C, Ho, Wo = y.shape
    y = y.reshape(N, C, Ho // 2, 2, Wo // 2, 2).mean(axis=(3, 5))
    y = y.reshape(N, -1)
    return y @ params["fc_w"].T + params["fc_b"]


# ----------------------------------- main ------------------------------------

if __name__ == "__main__":
    N, C, H, W = 2, 4, 16, 16
    n_classes = 10
    Ho = (H + 2 - 3) // 2 + 1
    Wo = (W + 2 - 3) // 2 + 1
    Hp, Wp = Ho // 2, Wo // 2
    F = C * Hp * Wp

    key = jax.random.PRNGKey(0)
    kx, kw, kg, kb, km, kv, kfw, kfb = jax.random.split(key, 8)

    x = jax.random.normal(kx, (N, C, H, W), dtype=jnp.float32)
    params = {
        "conv_w": jax.random.normal(kw, (C, C, 3, 3), dtype=jnp.float32) * 0.2,
        "bn_gamma": jax.random.uniform(kg, (C,), minval=0.5, maxval=1.5).astype(jnp.float32),
        "bn_beta": jax.random.normal(kb, (C,), dtype=jnp.float32) * 0.1,
        "bn_mean": jax.random.normal(km, (C,), dtype=jnp.float32) * 0.1,
        "bn_var": jax.random.uniform(kv, (C,), minval=0.5, maxval=1.5).astype(jnp.float32),
        "fc_w": jax.random.normal(kfw, (n_classes, F), dtype=jnp.float32) * 0.1,
        "fc_b": jax.random.normal(kfb, (n_classes,), dtype=jnp.float32) * 0.1,
    }

    ref = jax.block_until_ready(reference_forward(x, params, n_classes))

    # f32 path: strict correctness check.
    out_f32 = jax.block_until_ready(
        exit_block_forward(x, params, n_classes, use_bf16=False))
    assert out_f32.shape == (N, n_classes), out_f32.shape
    if not jnp.allclose(out_f32, ref, atol=1e-4, rtol=1e-4):
        raise AssertionError(f"f32 mismatch vs reference: max abs err "
                             f"{float(jnp.max(jnp.abs(out_f32 - ref)))}")

    # bf16-MXU-input path (f32 accumulation): relaxed tolerance vs the f32 reference.
    out_bf16 = jax.block_until_ready(
        exit_block_forward(x, params, n_classes, use_bf16=True))
    assert out_bf16.shape == (N, n_classes), out_bf16.shape
    if not jnp.allclose(out_bf16, ref, atol=1e-1, rtol=1e-1):
        raise AssertionError(f"bf16 mismatch vs reference: max abs err "
                             f"{float(jnp.max(jnp.abs(out_bf16 - ref)))}")

    print("KERNEL_OK")
</pallas_src>

<mosaic_0001>
module attributes {stable_mosaic.version = 11 : i64} {
  func.func @_conv_bn_relu_pool_kernel(%arg0: i32, %arg1: memref<4x16x36xf32, #tpu.memory_space<vmem>>, %arg2: memref<36x4xf32, #tpu.memory_space<vmem>>, %arg3: memref<1x4xf32, #tpu.memory_space<vmem>>, %arg4: memref<16x4xf32, #tpu.memory_space<vmem>>) attributes {dimension_semantics = [#tpu.dimension_semantics<parallel>], iteration_bounds = array<i64: 2>, scalar_prefetch = 0 : i64, scratch_operands = 0 : i64, tpu.core_type = #tpu.core_type<tc>, window_params = [{transform_indices = @transform_0, window_bounds = array<i64: 4, 16, 36>}, {pipeline_mode = #tpu.pipeline_mode<synchronous>, transform_indices = @transform_1, window_bounds = array<i64: 36, 4>}, {pipeline_mode = #tpu.pipeline_mode<synchronous>, transform_indices = @transform_2, window_bounds = array<i64: 1, 4>}, {transform_indices = @transform_3, window_bounds = array<i64: 16, 4>}]} {
    %c0 = arith.constant 0 : index
    %c0_0 = arith.constant 0 : index
    %0 = vector.load %arg2[%c0, %c0_0] : memref<36x4xf32, #tpu.memory_space<vmem>>, vector<36x4xf32>
    %c0_1 = arith.constant 0 : index
    %c0_2 = arith.constant 0 : index
    %1 = vector.load %arg3[%c0_1, %c0_2] : memref<1x4xf32, #tpu.memory_space<vmem>>, vector<1x4xf32>
    %c0_3 = arith.constant 0 : index
    %c0_4 = arith.constant 0 : index
    %c0_5 = arith.constant 0 : index
    %2 = vector.load %arg1[%c0_3, %c0_4, %c0_5] : memref<4x16x36xf32, #tpu.memory_space<vmem>>, vector<1x16x36xf32>
    %3 = vector.shape_cast %2 : vector<1x16x36xf32> to vector<16x36xf32>
    %cst = arith.constant dense<0.000000e+00> : vector<16x4xf32>
    %4 = tpu.matmul %3, %0, %cst {dimension_numbers = #tpu.dot_dimension_numbers<[1], [0], [0], [1], [0, 0, 1, 1], [], []>} : vector<16x36xf32>, vector<36x4xf32>, vector<16x4xf32> -> vector<16x4xf32>
    %5 = vector.broadcast %1 : vector<1x4xf32> to vector<16x4xf32>
    %6 = arith.addf %4, %5 : vector<16x4xf32>
    %cst_6 = arith.constant 0.000000e+00 : f32
    %7 = vector.broadcast %cst_6 : f32 to vector<16x4xf32>
    %8 = arith.maximumf %6, %7 : vector<16x4xf32>
    %c1 = arith.constant 1 : index
    %c0_7 = arith.constant 0 : index
    %c0_8 = arith.constant 0 : index
    %9 = vector.load %arg1[%c1, %c0_7, %c0_8] : memref<4x16x36xf32, #tpu.memory_space<vmem>>, vector<1x16x36xf32>
    %10 = vector.shape_cast %9 : vector<1x16x36xf32> to vector<16x36xf32>
    %cst_9 = arith.constant dense<0.000000e+00> : vector<16x4xf32>
    %11 = tpu.matmul %10, %0, %cst_9 {dimension_numbers = #tpu.dot_dimension_numbers<[1], [0], [0], [1], [0, 0, 1, 1], [], []>} : vector<16x36xf32>, vector<36x4xf32>, vector<16x4xf32> -> vector<16x4xf32>
    %12 = vector.broadcast %1 : vector<1x4xf32> to vector<16x4xf32>
    %13 = arith.addf %11, %12 : vector<16x4xf32>
    %cst_10 = arith.constant 0.000000e+00 : f32
    %14 = vector.broadcast %cst_10 : f32 to vector<16x4xf32>
    %15 = arith.maximumf %13, %14 : vector<16x4xf32>
    %16 = arith.addf %8, %15 : vector<16x4xf32>
    %c2 = arith.constant 2 : index
    %c0_11 = arith.constant 0 : index
    %c0_12 = arith.constant 0 : index
    %17 = vector.load %arg1[%c2, %c0_11, %c0_12] : memref<4x16x36xf32, #tpu.memory_space<vmem>>, vector<1x16x36xf32>
    %18 = vector.shape_cast %17 : vector<1x16x36xf32> to vector<16x36xf32>
    %cst_13 = arith.constant dense<0.000000e+00> : vector<16x4xf32>
    %19 = tpu.matmul %18, %0, %cst_13 {dimension_numbers = #tpu.dot_dimension_numbers<[1], [0], [0], [1], [0, 0, 1, 1], [], []>} : vector<16x36xf32>, vector<36x4xf32>, vector<16x4xf32> -> vector<16x4xf32>
    %20 = vector.broadcast %1 : vector<1x4xf32> to vector<16x4xf32>
    %21 = arith.addf %19, %20 : vector<16x4xf32>
    %cst_14 = arith.constant 0.000000e+00 : f32
    %22 = vector.broadcast %cst_14 : f32 to vector<16x4xf32>
    %23 = arith.maximumf %21, %22 : vector<16x4xf32>
    %24 = arith.addf %16, %23 : vector<16x4xf32>
    %c3 = arith.constant 3 : index
    %c0_15 = arith.constant 0 : index
    %c0_16 = arith.constant 0 : index
    %25 = vector.load %arg1[%c3, %c0_15, %c0_16] : memref<4x16x36xf32, #tpu.memory_space<vmem>>, vector<1x16x36xf32>
    %26 = vector.shape_cast %25 : vector<1x16x36xf32> to vector<16x36xf32>
    %cst_17 = arith.constant dense<0.000000e+00> : vector<16x4xf32>
    %27 = tpu.matmul %26, %0, %cst_17 {dimension_numbers = #tpu.dot_dimension_numbers<[1], [0], [0], [1], [0, 0, 1, 1], [], []>} : vector<16x36xf32>, vector<36x4xf32>, vector<16x4xf32> -> vector<16x4xf32>
    %28 = vector.broadcast %1 : vector<1x4xf32> to vector<16x4xf32>
    %29 = arith.addf %27, %28 : vector<16x4xf32>
    %cst_18 = arith.constant 0.000000e+00 : f32
    %30 = vector.broadcast %cst_18 : f32 to vector<16x4xf32>
    %31 = arith.maximumf %29, %30 : vector<16x4xf32>
    %32 = arith.addf %24, %31 : vector<16x4xf32>
    %cst_19 = arith.constant 2.500000e-01 : f32
    %33 = vector.broadcast %cst_19 : f32 to vector<16x4xf32>
    %34 = arith.mulf %32, %33 : vector<16x4xf32>
    %c0_20 = arith.constant 0 : index
    %c0_21 = arith.constant 0 : index
    %35 = vector.load %arg4[%c0_20, %c0_21] : memref<16x4xf32, #tpu.memory_space<vmem>>, vector<16x4xf32>
    tpu.vector_store %arg4[%c0_20, %c0_21], %34 {strides = array<i32>} : memref<16x4xf32, #tpu.memory_space<vmem>>, vector<16x4xf32>,
    return
  }
  func.func @transform_0(%arg0: i32) -> (i32, i32, i32) {
    %c0_i32 = arith.constant 0 : i32
    %c0_i32_0 = arith.constant 0 : i32
    %c0_i32_1 = arith.constant 0 : i32
    return %c0_i32, %arg0, %c0_i32_0 : i32, i32, i32
  }
  func.func @transform_1(%arg0: i32) -> (i32, i32) {
    %c0_i32 = arith.constant 0 : i32
    %c0_i32_0 = arith.constant 0 : i32
    %c0_i32_1 = arith.constant 0 : i32
    return %c0_i32, %c0_i32_0 : i32, i32
  }
  func.func @transform_2(%arg0: i32) -> (i32, i32) {
    %c0_i32 = arith.constant 0 : i32
    %c0_i32_0 = arith.constant 0 : i32
    %c0_i32_1 = arith.constant 0 : i32
    return %c0_i32, %c0_i32_0 : i32, i32
  }
  func.func @transform_3(%arg0: i32) -> (i32, i32) {
    %c0_i32 = arith.constant 0 : i32
    %c0_i32_0 = arith.constant 0 : i32
    return %arg0, %c0_i32 : i32, i32
  }
}

</mosaic_0001>

<llo_original>
// kernel: tpu_custom_call.1
$region0: #{tpu_custom_call.1}
  #allocation0 [shape = 'u32[]', space=smem, size = 0x4, offset = 0x4, fixed_abs, tag = 'smem constant byte address 0x4 - core index']
  #allocation1 [shape = 'u32[144,128]{1,0:T(1,128)}', space=vmem, size = 0x12000, scoped, tag = 'internal scratch']
  #allocation4 [shape = 's32[]', space=sflag, size = 0x4, offset = 0, fixed_abs, tag = 'sflag constant byte address 0x0 - dummy sync flag']
  %s0 = inlined_call_operand.hbm [shape: f32[4,32,36], index: 0, kind: input, shape index: {}]
  %s1 = inlined_call_operand.vmem [shape: f32[36,4], index: 1, kind: input, shape index: {}]
  %s2 = inlined_call_operand.vmem [shape: f32[1,4], index: 2, kind: input, shape index: {}]
  %s3 = inlined_call_operand.vmem [shape: f32[32,4], index: 3, kind: output, shape index: {}]
  %s4 = sld [smem:[#allocation0]]
  $region49: #{tpu_custom_call.1} parent=0
    _
  %s6 = ssub.s32 1, %s4
  %s7 = scalar_select 0, %s6, %s4
  $region1: #{tpu_custom_call.1} parent=0
    #allocation2 [shape = 'u8[65536]{0}', space=vmem, size = 0x10000, scoped, tag = 'input window, operand 0']
    #allocation3 [shape = 's32[2]{0}', space=sflag, size = 0x8, scoped, tag = 'scoped memory for tpu_custom_call.1']
    %8 = vsyncpa [#allocation3], 0
    %s9 = scalar_lea.sflag [#allocation3], 1
    %10 = vsyncpa %s9, 0
    loop: start=0, step=1, limit=4
    $region2: #{tpu_custom_call.1} parent=1 // loop_pre_header
      _
    $region3: #{tpu_custom_call.1} parent=1 // loop_header
      %s12 = sphi 0, %s16
      %p13 = scmp.ge.s32.totalorder %s12, 4
      %s22 = sphi 0, %s24
      %s25 = sphi 0, %s22
      %s26 = sphi 0, %s25
      %s42 = sphi 0, %s26
      %s46 = sphi 0, %s46
      %s48 = sphi 0, %s46
      %s49 = sphi 0, %s48
      %s63 = sphi 0, %s49
      %s67 = sphi 0, %s67
      %s69 = sphi 0, %s67
      %s70 = sphi 0, %s69
      %s84 = sphi 0, %s70
      %s90 = sphi 0, %s92
      %s93 = sphi 0, %s90
      %s94 = sphi 0, %s93
      %s110 = sphi 0, %s94
    $region4: #{tpu_custom_call.1} parent=1 // loop_header_branch
      %15 = sbr.rel (%p13) target = $region8
    $region5: #{tpu_custom_call.1} parent=1 // loop_body
      %s17 = ssub.s32 %s12, 1
      %s18 = ssub.s32 %s12, 2
      %s19 = sadd.s32 %s12, 1
      %s20 = ssub.s32 %s12, %s19
      %p21 = scmp.eq.s32.totalorder %s20, 0
      %s23 = sadd.s32 %s22, 1
      %s24 = scalar_select %p21, %s22, %s23
      %p27 = pneg %p21
      %p28 = scmp.eq.s32.totalorder %s12, 1
      %p29 = por %p27, %p28
      %p30 = scmp.ne.s32.totalorder %s22, %s25
      %p31 = scmp.eq.s32.totalorder %s12, 0
      %p32 = por %p30, %p31
      %p33 = scmp.ne.s32.totalorder %s22, %s25
      %p34 = scmp.eq.s32.totalorder %s17, 1
      %p35 = por %p33, %p34
      %p36 = scmp.ne.s32.totalorder %s25, %s26
      %p37 = scmp.eq.s32.totalorder %s17, 0
      %p38 = por %p36, %p37
      %p39 = scmp.ne.s32.totalorder %s25, %s26
      %p40 = scmp.eq.s32.totalorder %s18, 1
      %p41 = por %p39, %p40
      %p43 = scmp.ne.s32.totalorder %s26, %s42
      %p44 = scmp.eq.s32.totalorder %s18, 0
      %p45 = por %p43, %p44
      %s47 = sadd.s32 %s46, 1
      %p50 = scmp.eq.s32.totalorder %s12, 1
      %p51 = scmp.ne.s32.totalorder %s46, %s48
      %p52 = scmp.eq.s32.totalorder %s12, 0
      %p53 = por %p51, %p52
      %p54 = scmp.ne.s32.totalorder %s46, %s48
      %p55 = scmp.eq.s32.totalorder %s17, 1
      %p56 = por %p54, %p55
      %p57 = scmp.ne.s32.totalorder %s48, %s49
      %p58 = scmp.eq.s32.totalorder %s17, 0
      %p59 = por %p57, %p58
      %p60 = scmp.ne.s32.totalorder %s48, %s49
      %p61 = scmp.eq.s32.totalorder %s18, 1
      %p62 = por %p60, %p61
      %p64 = scmp.ne.s32.totalorder %s49, %s63
      %p65 = scmp.eq.s32.totalorder %s18, 0
      %p66 = por %p64, %p65
      %s68 = sadd.s32 %s67, 1
      %p71 = scmp.eq.s32.totalorder %s12, 1
      %p72 = scmp.ne.s32.totalorder %s67, %s69
      %p73 = scmp.eq.s32.totalorder %s12, 0
      %p74 = por %p72, %p73
      %p75 = scmp.ne.s32.totalorder %s67, %s69
      %p76 = scmp.eq.s32.totalorder %s17, 1
      %p77 = por %p75, %p76
      %p78 = scmp.ne.s32.totalorder %s69, %s70
      %p79 = scmp.eq.s32.totalorder %s17, 0
      %p80 = por %p78, %p79
      %p81 = scmp.ne.s32.totalorder %s69, %s70
      %p82 = scmp.eq.s32.totalorder %s18, 1
      %p83 = por %p81, %p82
      %p85 = scmp.ne.s32.totalorder %s70, %s84
      %p86 = scmp.eq.s32.totalorder %s18, 0
      %p87 = por %p85, %p86
      %s88 = ssub.s32 %s12, %s19
      %p89 = scmp.eq.s32.totalorder %s88, 0
      %s91 = sadd.s32 %s90, 1
      %s92 = scalar_select %p89, %s90, %s91
      %p95 = pneg %p89
      %p96 = scmp.eq.s32.totalorder %s12, 1
      %p97 = por %p95, %p96
      %p98 = scmp.ne.s32.totalorder %s90, %s93
      %p99 = scmp.eq.s32.totalorder %s12, 0
      %p100 = por %p98, %p99
      %p101 = scmp.ne.s32.totalorder %s90, %s93
      %p102 = scmp.eq.s32.totalorder %s17, 1
      %p103 = por %p101, %p102
      %p104 = scmp.ne.s32.totalorder %s93, %s94
      %p105 = scmp.eq.s32.totalorder %s17, 0
      %p106 = por %p104, %p105
      %p107 = scmp.ne.s32.totalorder %s93, %s94
      %p108 = scmp.eq.s32.totalorder %s18, 1
      %p109 = por %p107, %p108
      %p111 = scmp.ne.s32.totalorder %s94, %s110
      %p112 = scmp.eq.s32.totalorder %s18, 0
      %p113 = por %p111, %p112
      %p114 = scmp.le.s32.totalorder 1, %s12
      %p115 = scmp.lt.s32.totalorder %s12, 3
      %p116 = pnand %p114, %p115
      %p117 = pneg %p116
      // Predicated region
      $region9: #{tpu_custom_call.1} parent=5 // pred_check
        _
      $region10: #{tpu_custom_call.1} parent=5 // pred_check_branch
        %119 = sbr.rel (%p116) target = $region12
      $region11: #{tpu_custom_call.1} parent=5 // pred_region
        %s120 = ssub.s32 %s12, 1
        // Predicated region
        $region13: #{tpu_custom_call.1} parent=11 // pred_check
          %p121 = pneg %p59
        $region14: #{tpu_custom_call.1} parent=11 // pred_check_branch
          %123 = sbr.rel (%p121) target = $region16
        $region15: #{tpu_custom_call.1} parent=11 // pred_region
          _
        $region16: #{tpu_custom_call.1} parent=11 // pred_fallthru
          _
        // Predicated region
        $region17: #{tpu_custom_call.1} parent=11 // pred_check
          %p124 = pneg %p80
        $region18: #{tpu_custom_call.1} parent=11 // pred_check_branch
          %126 = sbr.rel (%p124) target = $region20
        $region19: #{tpu_custom_call.1} parent=11 // pred_region
          _
        $region20: #{tpu_custom_call.1} parent=11 // pred_fallthru
          _
      $region12: #{tpu_custom_call.1} parent=5 // pred_fallthru
        _
      %p127 = scmp.lt.s32.totalorder %s12, 2
      // Predicated region
      $region21: #{tpu_custom_call.1} parent=5 // pred_check
        %p128 = pneg %p127
      $region22: #{tpu_custom_call.1} parent=5 // pred_check_branch
        %130 = sbr.rel (%p128) target = $region24
      $region23: #{tpu_custom_call.1} parent=5 // pred_region
        // Predicated region
        $region25: #{tpu_custom_call.1} parent=23 // pred_check
          %p131 = pneg %p32
        $region26: #{tpu_custom_call.1} parent=23 // pred_check_branch
          %133 = sbr.rel (%p131) target = $region28
        $region27: #{tpu_custom_call.1} parent=23 // pred_region
          #allocation5 [shape = 'u32[6]{0}', space=smem, size = 0x18, scoped, tag = 'DMA stride descriptor']
          %s134 = sand.u32 %s22, 1
          %s135 = scalar_lea.sflag [#allocation3], %s134
          %s136 = sand.u32 %s22, 1
          %s137 = smul.addr %s136, 64
          %s138 = scalar_lea.vmem [#allocation2], %s137
          %s139 = smul.u32 2, %s12
          %s141 = ssub.s32 1024, 1024
          %142 = vsyncadd %s135, %s141
          %s143 = smul.addr %s139, 128
          %s144 = scalar_lea.hbm %s0, %s143
          %s146 = sshll.u32 1, 14
          %s147 = sxor.u32 4294967295, %s146
          %s149 = sld [smem:[#allocation0]]
          %s150 = sadd.s32 2, %s149
          %s152 = sshll.u32 7, 26
          %s153 = sxor.u32 4294967295, %s152
          %s154 = sand.u32 0, %s153
          %s155 = sshll.u32 %s150, 26
          %s156 = sor.u32 %s154, %s155
          %s157 = sshll.u32 %s138, 4
          %s158 = int_to_ptr.vmem [resolvable:$true] %s157
          %164 = sst [smem:[#allocation5]] 512
          %s165 = scalar_lea.smem [#allocation5], 1
          %166 = sst [smem:[%s165]] 256
          %s167 = scalar_lea.smem [#allocation5], 2
          %168 = sst [smem:[%s167]] 2
          %s169 = scalar_lea.smem [#allocation5], 3
          %170 = sst [smem:[%s169]] 128
          %s171 = scalar_lea.smem [#allocation5], 4
          %172 = sst [smem:[%s171]] 128
          %s173 = scalar_lea.smem [#allocation5], 5
          %174 = sst [smem:[%s173]] 8
          %176 = dma.general %s144, 1024, %s158, %s135, [#allocation4], [#allocation5], %s156, 0
        $region28: #{tpu_custom_call.1} parent=23 // pred_fallthru
          _
      $region24: #{tpu_custom_call.1} parent=5 // pred_fallthru
        _
      %p177 = scmp.le.s32.totalorder 1, %s12
      %p178 = scmp.lt.s32.totalorder %s12, 3
      %p179 = pnand %p177, %p178
      %p180 = pneg %p179
      // Predicated region
      $region29: #{tpu_custom_call.1} parent=5 // pred_check
        _
      $region30: #{tpu_custom_call.1} parent=5 // pred_check_branch
        %182 = sbr.rel (%p179) target = $region32
      $region31: #{tpu_custom_call.1} parent=5 // pred_region
        %s183 = ssub.s32 %s12, 1
        %s184 = sand.u32 %s25, 1
        %s185 = scalar_lea.sflag [#allocation3], %s184
        %s186 = sand.u32 %s25, 1
        %s187 = smul.addr %s186, 64
        %s188 = scalar_lea.vmem [#allocation2], %s187
        // Predicated region
        $region33: #{tpu_custom_call.1} parent=31 // pred_check
          %p189 = pneg %p38
        $region34: #{tpu_custom_call.1} parent=31 // pred_check_branch
          %191 = sbr.rel (%p189) target = $region36
        $region35: #{tpu_custom_call.1} parent=31 // pred_region
          %192 = dma.done %s185, 1024
        $region36: #{tpu_custom_call.1} parent=31 // pred_fallthru
          _
        %s193 = sand.u32 %s25, 1
        %s194 = scalar_lea.sflag [#allocation3], %s193
        %s195 = sand.u32 %s25, 1
        %s196 = smul.addr %s195, 64
        %s197 = scalar_lea.vmem [#allocation2], %s196
        %p198 = pneg %p38
        %p199 = pneg %p35
        %p200 = pneg %p59
        %p201 = pneg %p56
        %p202 = pneg %p80
        %p203 = pneg %p77
        %p204 = pneg %p106
        %p205 = pneg %p103
        %s206 = smul.u32 2, %s17
        %p207 = scmp.lt.s32.totalorder %s206, 3
        %s208 = scalar_select %p207, %s206, 3
        %s209 = smul.addr %s208, 8
        %s210 = scalar_lea.vmem %s3, %s209
        %s211 = smul.u32 2, %s17
        %s212 = smul.u32 2, %s17
        %p213 = scmp.lt.s32.totalorder %s212, 3
        %s214 = scalar_select %p213, %s212, 3
        %s215 = smul.addr %s214, 8
        %s216 = scalar_lea.vmem %s3, %s215
        %s217 = smul.u32 2, %s17
        %v218 = vld [vmem:[%s1] sm:$0xff]
        %v219 = vld [vmem:[%s1 + $0x8] sm:$0xff]
        %v220 = vld [vmem:[%s1 + $0x10] sm:$0xff]
        %v221 = vld [vmem:[%s1 + $0x18] sm:$0xff]
        %v222 = vld [vmem:[%s1 + $0x20] sm:$0xf]
        %v223 = vld [vmem:[%s2] sm:$0x1]
        %v224 = vld [vmem:[%s188] sm:$0xff]
        %v225 = vld [vmem:[%s188 + $0x8] sm:$0xff]
        %v227 = vlaneseq
        %v228 = vshrl.u32 %v227, 7
        %v229 = vsub.s32 0, %v228
        %v230 = vrot.slane %v223, %v229
        %vm232 = vcmask 293888
        %v234 = vsel %vm232, %v224, 0
        %v237 = vsel %vm232, %v225, 0
        %vm239 = vcmask 1043456
        %v241 = vsel %vm239, %v222, 0
        %243 = vmatprep.subr.mxu0 0.0
        %244 = vmatpush1.msra.mxu0 %v218
        %245 = vmatprep.subr.mxu0 0.0
        %246 = vmatpush1.msra.mxu0 %v219
        %247 = vmatprep.subr.mxu0 0.0
        %248 = vmatpush1.msra.mxu0 %v220
        %249 = vmatprep.subr.mxu0 0.0
        %250 = vmatpush1.msra.mxu0 %v221
        %251 = vmatprep.subr.mxu0 0.0
        %252 = vmatpush1.msra.mxu0 %v241
        %253 = vmatprep.subr.mxu0 0.0
        %254 = vmatpush1.msra.mxu0 0.0
        %255 = vmatprep.subr.mxu0 0.0
        %256 = vmatpush1.msra.mxu0 0.0
        %257 = vmatprep.subr.mxu0 0.0
        %258 = vmatpush1.msra.mxu0 0.0
        %259 = vmatprep.subr.mxu0 0.0
        %260 = vmatpush1.msra.mxu0 0.0
        %261 = vmatprep.subr.mxu0 0.0
        %262 = vmatpush1.msra.mxu0 0.0
        %263 = vmatprep.subr.mxu0 0.0
        %264 = vmatpush1.msra.mxu0 0.0
        %265 = vmatprep.subr.mxu0 0.0
        %266 = vmatpush1.msra.mxu0 0.0
        %267 = vmatprep.subr.mxu0 0.0
        %268 = vmatpush1.msra.mxu0 0.0
        %269 = vmatprep.subr.mxu0 0.0
        %270 = vmatpush1.msra.mxu0 0.0
        %271 = vmatprep.subr.mxu0 0.0
        %272 = vmatpush1.msra.mxu0 0.0
        %273 = vmatprep.subr.mxu0 0.0
        %274 = vmatpush1.msra.mxu0 0.0
        %275 = vmatprep.subr.mxu0 0.0
        %276 = vmatpush1.msra.mxu0 0.0
        %277 = vmatprep.subr.mxu0 0.0
        %278 = vmatpush1.msra.mxu0 0.0
        %279 = vmatprep.subr.mxu0 0.0
        %280 = vmatpush1.msra.mxu0 0.0
        %281 = vmatprep.subr.mxu0 0.0
        %282 = vmatpush1.msra.mxu0 0.0
        %283 = vmatprep.subr.mxu0 0.0
        %284 = vmatpush1.msra.mxu0 0.0
        %285 = vmatprep.subr.mxu0 0.0
        %286 = vmatpush1.msra.mxu0 0.0
        %287 = vmatprep.subr.mxu0 0.0
        %288 = vmatpush1.msra.mxu0 0.0
        %289 = vmatprep.subr.mxu0 0.0
        %290 = vmatpush1.msra.mxu0 0.0
        %291 = vmatprep.subr.mxu0 0.0
        %292 = vmatpush1.msra.mxu0 0.0
        %293 = vmatprep.subr.mxu0 0.0
        %294 = vmatpush1.msra.mxu0 0.0
        %295 = vmatprep.subr.mxu0 0.0
        %296 = vmatpush1.msra.mxu0 0.0
        %297 = vmatprep.subr.mxu0 0.0
        %298 = vmatpush1.msra.mxu0 0.0
        %299 = vmatprep.subr.mxu0 0.0
        %300 = vmatpush1.msra.mxu0 0.0
        %301 = vmatprep.subr.mxu0 0.0
        %302 = vmatpush1.msra.mxu0 0.0
        %303 = vmatprep.subr.mxu0 0.0
        %304 = vmatpush1.msra.mxu0 0.0
        %305 = vmatprep.subr.mxu0 0.0
        %306 = vmatpush1.msra.mxu0 0.0
        %307 = vmatprep.mubr.f32.mxu0 0.0
        %308 = vmatmul.mubr.f32.gmra.mrb[0].mxu0 %v234
        %v309 = vpop.f32.mrb[0].mxu0
        %v310 = vadd.f32 %v230, %v309
        %v311 = vpop.f32.mrb[0].mxu0
        %312 = vmatprep.mubr.f32.mxu0 0.0
        %313 = vmatmul.mubr.f32.gmra.mrb[0].mxu0 %v237
        %v314 = vpop.f32.mrb[0].mxu0
        %v315 = vadd.f32 %v230, %v314
        %v316 = vpop.f32.mrb[0].mxu0
        %317 = vdwg.mxu0
        %v318 = vmax.f32 %v310, 0.0
        %v319 = vmax.f32 %v315, 0.0
        %s320 = scalar_lea.vmem %s188, 16 [#allocation2]
        %v321 = vld [vmem:[%s320] sm:$0xff]
        %v322 = vld [vmem:[%s320 + $0x8] sm:$0xff]
        %v324 = vsel %vm232, %v321, 0
        %v327 = vsel %vm232, %v322, 0
        %329 = vmatprep.subr.mxu0 0.0
        %330 = vmatpush1.msra.mxu0 %v218
        %331 = vmatprep.subr.mxu0 0.0
        %332 = vmatpush1.msra.mxu0 %v219
        %333 = vmatprep.subr.mxu0 0.0
        %334 = vmatpush1.msra.mxu0 %v220
        %335 = vmatprep.subr.mxu0 0.0
        %336 = vmatpush1.msra.mxu0 %v221
        %337 = vmatprep.subr.mxu0 0.0
        %338 = vmatpush1.msra.mxu0 %v241
        %339 = vmatprep.subr.mxu0 0.0
        %340 = vmatpush1.msra.mxu0 0.0
        %341 = vmatprep.subr.mxu0 0.0
        %342 = vmatpush1.msra.mxu0 0.0
        %343 = vmatprep.subr.mxu0 0.0
        %344 = vmatpush1.msra.mxu0 0.0
        %345 = vmatprep.subr.mxu0 0.0
        %346 = vmatpush1.msra.mxu0 0.0
        %347 = vmatprep.subr.mxu0 0.0
        %348 = vmatpush1.msra.mxu0 0.0
        %349 = vmatprep.subr.mxu0 0.0
        %350 = vmatpush1.msra.mxu0 0.0
        %351 = vmatprep.subr.mxu0 0.0
        %352 = vmatpush1.msra.mxu0 0.0
        %353 = vmatprep.subr.mxu0 0.0
        %354 = vmatpush1.msra.mxu0 0.0
        %355 = vmatprep.subr.mxu0 0.0
        %356 = vmatpush1.msra.mxu0 0.0
        %357 = vmatprep.subr.mxu0 0.0
        %358 = vmatpush1.msra.mxu0 0.0
        %359 = vmatprep.subr.mxu0 0.0
        %360 = vmatpush1.msra.mxu0 0.0
        %361 = vmatprep.subr.mxu0 0.0
        %362 = vmatpush1.msra.mxu0 0.0
        %363 = vmatprep.subr.mxu0 0.0
        %364 = vmatpush1.msra.mxu0 0.0
        %365 = vmatprep.subr.mxu0 0.0
        %366 = vmatpush1.msra.mxu0 0.0
        %367 = vmatprep.subr.mxu0 0.0
        %368 = vmatpush1.msra.mxu0 0.0
        %369 = vmatprep.subr.mxu0 0.0
        %370 = vmatpush1.msra.mxu0 0.0
        %371 = vmatprep.subr.mxu0 0.0
        %372 = vmatpush1.msra.mxu0 0.0
        %373 = vmatprep.subr.mxu0 0.0
        %374 = vmatpush1.msra.mxu0 0.0
        %375 = vmatprep.subr.mxu0 0.0
        %376 = vmatpush1.msra.mxu0 0.0
        %377 = vmatprep.subr.mxu0 0.0
        %378 = vmatpush1.msra.mxu0 0.0
        %379 = vmatprep.subr.mxu0 0.0
        %380 = vmatpush1.msra.mxu0 0.0
        %381 = vmatprep.subr.mxu0 0.0
        %382 = vmatpush1.msra.mxu0 0.0
        %383 = vmatprep.subr.mxu0 0.0
        %384 = vmatpush1.msra.mxu0 0.0
        %385 = vmatprep.subr.mxu0 0.0
        %386 = vmatpush1.msra.mxu0 0.0
        %387 = vmatprep.subr.mxu0 0.0
        %388 = vmatpush1.msra.mxu0 0.0
        %389 = vmatprep.subr.mxu0 0.0
        %390 = vmatpush1.msra.mxu0 0.0
        %391 = vmatprep.subr.mxu0 0.0
        %392 = vmatpush1.msra.mxu0 0.0
        %393 = vmatprep.mubr.f32.mxu0 0.0
        %394 = vmatmul.mubr.f32.gmra.mrb[0].mxu0 %v324
        %v395 = vpop.f32.mrb[0].mxu0
        %v396 = vadd.f32 %v230, %v395
        %v397 = vpop.f32.mrb[0].mxu0
        %398 = vmatprep.mubr.f32.mxu0 0.0
        %399 = vmatmul.mubr.f32.gmra.mrb[0].mxu0 %v327
        %v400 = vpop.f32.mrb[0].mxu0
        %v401 = vadd.f32 %v230, %v400
        %v402 = vpop.f32.mrb[0].mxu0
        %403 = vdwg.mxu0
        %v404 = vmax.f32 %v396, 0.0
        %v405 = vmax.f32 %v401, 0.0
        %v406 = vadd.f32 %v318, %v404
        %v407 = vadd.f32 %v319, %v405
        %s408 = scalar_lea.vmem %s188, 32 [#allocation2]
        %v409 = vld [vmem:[%s408] sm:$0xff]
        %v410 = vld [vmem:[%s408 + $0x8] sm:$0xff]
        %v412 = vsel %vm232, %v409, 0
        %v415 = vsel %vm232, %v410, 0
        %417 = vmatprep.subr.mxu0 0.0
        %418 = vmatpush1.msra.mxu0 %v218
        %419 = vmatprep.subr.mxu0 0.0
        %420 = vmatpush1.msra.mxu0 %v219
        %421 = vmatprep.subr.mxu0 0.0
        %422 = vmatpush1.msra.mxu0 %v220
        %423 = vmatprep.subr.mxu0 0.0
        %424 = vmatpush1.msra.mxu0 %v221
        %425 = vmatprep.subr.mxu0 0.0
        %426 = vmatpush1.msra.mxu0 %v241
        %427 = vmatprep.subr.mxu0 0.0
        %428 = vmatpush1.msra.mxu0 0.0
        %429 = vmatprep.subr.mxu0 0.0
        %430 = vmatpush1.msra.mxu0 0.0
        %431 = vmatprep.subr.mxu0 0.0
        %432 = vmatpush1.msra.mxu0 0.0
        %433 = vmatprep.subr.mxu0 0.0
        %434 = vmatpush1.msra.mxu0 0.0
        %435 = vmatprep.subr.mxu0 0.0
        %436 = vmatpush1.msra.mxu0 0.0
        %437 = vmatprep.subr.mxu0 0.0
        %438 = vmatpush1.msra.mxu0 0.0
        %439 = vmatprep.subr.mxu0 0.0
        %440 = vmatpush1.msra.mxu0 0.0
        %441 = vmatprep.subr.mxu0 0.0
        %442 = vmatpush1.msra.mxu0 0.0
        %443 = vmatprep.subr.mxu0 0.0
        %444 = vmatpush1.msra.mxu0 0.0
        %445 = vmatprep.subr.mxu0 0.0
        %446 = vmatpush1.msra.mxu0 0.0
        %447 = vmatprep.subr.mxu0 0.0
        %448 = vmatpush1.msra.mxu0 0.0
        %449 = vmatprep.subr.mxu0 0.0
        %450 = vmatpush1.msra.mxu0 0.0
        %451 = vmatprep.subr.mxu0 0.0
        %452 = vmatpush1.msra.mxu0 0.0
        %453 = vmatprep.subr.mxu0 0.0
        %454 = vmatpush1.msra.mxu0 0.0
        %455 = vmatprep.subr.mxu0 0.0
        %456 = vmatpush1.msra.mxu0 0.0
        %457 = vmatprep.subr.mxu0 0.0
        %458 = vmatpush1.msra.mxu0 0.0
        %459 = vmatprep.subr.mxu0 0.0
        %460 = vmatpush1.msra.mxu0 0.0
        %461 = vmatprep.subr.mxu0 0.0
        %462 = vmatpush1.msra.mxu0 0.0
        %463 = vmatprep.subr.mxu0 0.0
        %464 = vmatpush1.msra.mxu0 0.0
        %465 = vmatprep.subr.mxu0 0.0
        %466 = vmatpush1.msra.mxu0 0.0
        %467 = vmatprep.subr.mxu0 0.0
        %468 = vmatpush1.msra.mxu0 0.0
        %469 = vmatprep.subr.mxu0 0.0
        %470 = vmatpush1.msra.mxu0 0.0
        %471 = vmatprep.subr.mxu0 0.0
        %472 = vmatpush1.msra.mxu0 0.0
        %473 = vmatprep.subr.mxu0 0.0
        %474 = vmatpush1.msra.mxu0 0.0
        %475 = vmatprep.subr.mxu0 0.0
        %476 = vmatpush1.msra.mxu0 0.0
        %477 = vmatprep.subr.mxu0 0.0
        %478 = vmatpush1.msra.mxu0 0.0
        %479 = vmatprep.subr.mxu0 0.0
        %480 = vmatpush1.msra.mxu0 0.0
        %481 = vmatprep.mubr.f32.mxu0 0.0
        %482 = vmatmul.mubr.f32.gmra.mrb[0].mxu0 %v412
        %v483 = vpop.f32.mrb[0].mxu0
        %v484 = vadd.f32 %v230, %v483
        %v485 = vpop.f32.mrb[0].mxu0
        %486 = vmatprep.mubr.f32.mxu0 0.0
        %487 = vmatmul.mubr.f32.gmra.mrb[0].mxu0 %v415
        %v488 = vpop.f32.mrb[0].mxu0
        %v489 = vadd.f32 %v230, %v488
        %v490 = vpop.f32.mrb[0].mxu0
        %491 = vdwg.mxu0
        %v492 = vmax.f32 %v484, 0.0
        %v493 = vmax.f32 %v489, 0.0
        %v494 = vadd.f32 %v406, %v492
        %v495 = vadd.f32 %v407, %v493
        %s496 = scalar_lea.vmem %s188, 48 [#allocation2]
        %v497 = vld [vmem:[%s496] sm:$0xff]
        %v498 = vld [vmem:[%s496 + $0x8] sm:$0xff]
        %v500 = vsel %vm232, %v497, 0
        %v503 = vsel %vm232, %v498, 0
        %505 = vmatprep.subr.mxu0 0.0
        %506 = vmatpush1.msra.mxu0 %v218
        %507 = vmatprep.subr.mxu0 0.0
        %508 = vmatpush1.msra.mxu0 %v219
        %509 = vmatprep.subr.mxu0 0.0
        %510 = vmatpush1.msra.mxu0 %v220
        %511 = vmatprep.subr.mxu0 0.0
        %512 = vmatpush1.msra.mxu0 %v221
        %513 = vmatprep.subr.mxu0 0.0
        %514 = vmatpush1.msra.mxu0 %v241
        %515 = vmatprep.subr.mxu0 0.0
        %516 = vmatpush1.msra.mxu0 0.0
        %517 = vmatprep.subr.mxu0 0.0
        %518 = vmatpush1.msra.mxu0 0.0
        %519 = vmatprep.subr.mxu0 0.0
        %520 = vmatpush1.msra.mxu0 0.0
        %521 = vmatprep.subr.mxu0 0.0
        %522 = vmatpush1.msra.mxu0 0.0
        %523 = vmatprep.subr.mxu0 0.0
        %524 = vmatpush1.msra.mxu0 0.0
        %525 = vmatprep.subr.mxu0 0.0
        %526 = vmatpush1.msra.mxu0 0.0
        %527 = vmatprep.subr.mxu0 0.0
        %528 = vmatpush1.msra.mxu0 0.0
        %529 = vmatprep.subr.mxu0 0.0
        %530 = vmatpush1.msra.mxu0 0.0
        %531 = vmatprep.subr.mxu0 0.0
        %532 = vmatpush1.msra.mxu0 0.0
        %533 = vmatprep.subr.mxu0 0.0
        %534 = vmatpush1.msra.mxu0 0.0
        %535 = vmatprep.subr.mxu0 0.0
        %536 = vmatpush1.msra.mxu0 0.0
        %537 = vmatprep.subr.mxu0 0.0
        %538 = vmatpush1.msra.mxu0 0.0
        %539 = vmatprep.subr.mxu0 0.0
        %540 = vmatpush1.msra.mxu0 0.0
        %541 = vmatprep.subr.mxu0 0.0
        %542 = vmatpush1.msra.mxu0 0.0
        %543 = vmatprep.subr.mxu0 0.0
        %544 = vmatpush1.msra.mxu0 0.0
        %545 = vmatprep.subr.mxu0 0.0
        %546 = vmatpush1.msra.mxu0 0.0
        %547 = vmatprep.subr.mxu0 0.0
        %548 = vmatpush1.msra.mxu0 0.0
        %549 = vmatprep.subr.mxu0 0.0
        %550 = vmatpush1.msra.mxu0 0.0
        %551 = vmatprep.subr.mxu0 0.0
        %552 = vmatpush1.msra.mxu0 0.0
        %553 = vmatprep.subr.mxu0 0.0
        %554 = vmatpush1.msra.mxu0 0.0
        %555 = vmatprep.subr.mxu0 0.0
        %556 = vmatpush1.msra.mxu0 0.0
        %557 = vmatprep.subr.mxu0 0.0
        %558 = vmatpush1.msra.mxu0 0.0
        %559 = vmatprep.subr.mxu0 0.0
        %560 = vmatpush1.msra.mxu0 0.0
        %561 = vmatprep.subr.mxu0 0.0
        %562 = vmatpush1.msra.mxu0 0.0
        %563 = vmatprep.subr.mxu0 0.0
        %564 = vmatpush1.msra.mxu0 0.0
        %565 = vmatprep.subr.mxu0 0.0
        %566 = vmatpush1.msra.mxu0 0.0
        %567 = vmatprep.subr.mxu0 0.0
        %568 = vmatpush1.msra.mxu0 0.0
        %569 = vmatprep.mubr.f32.mxu0 0.0
        %570 = vmatmul.mubr.f32.gmra.mrb[0].mxu0 %v500
        %v571 = vpop.f32.mrb[0].mxu0
        %v572 = vadd.f32 %v230, %v571
        %v573 = vpop.f32.mrb[0].mxu0
        %574 = vmatprep.mubr.f32.mxu0 0.0
        %575 = vmatmul.mubr.f32.gmra.mrb[0].mxu0 %v503
        %v576 = vpop.f32.mrb[0].mxu0
        %v577 = vadd.f32 %v230, %v576
        %v578 = vpop.f32.mrb[0].mxu0
        %579 = vdwg.mxu0
        %v580 = vmax.f32 %v572, 0.0
        %v581 = vmax.f32 %v577, 0.0
        %v582 = vadd.f32 %v494, %v580
        %v583 = vadd.f32 %v495, %v581
        %v584 = vmul.f32 %v582, 0.25
        %v585 = vmul.f32 %v583, 0.25
        %vm586 = vcmask 31744
        %587 = vst.msk [vmem:[%s216] sm:$0xff] %vm586, %v584
        %588 = vst.msk [vmem:[%s216 + $0x8] sm:$0xff] %vm586, %v585
        %s589 = smul.u32 2, %s17
        %p590 = scmp.lt.s32.totalorder %s589, 3
        %s591 = scalar_select %p590, %s589, 3
        %s592 = smul.addr %s591, 8
        %s593 = scalar_lea.vmem %s3, %s592
        // Predicated region
        $region37: #{tpu_custom_call.1} parent=31 // pred_check
          %p594 = pneg %p103
        $region38: #{tpu_custom_call.1} parent=31 // pred_check_branch
          %596 = sbr.rel (%p594) target = $region40
        $region39: #{tpu_custom_call.1} parent=31 // pred_region
          %s597 = smul.u32 2, %s17
        $region40: #{tpu_custom_call.1} parent=31 // pred_fallthru
          _
      $region32: #{tpu_custom_call.1} parent=5 // pred_fallthru
        _
      %p598 = scmp.le.s32.totalorder 2, %s12
      // Predicated region
      $region41: #{tpu_custom_call.1} parent=5 // pred_check
        %p599 = pneg %p598
      $region42: #{tpu_custom_call.1} parent=5 // pred_check_branch
        %601 = sbr.rel (%p599) target = $region44
      $region43: #{tpu_custom_call.1} parent=5 // pred_region
        %s602 = ssub.s32 %s12, 2
        // Predicated region
        $region45: #{tpu_custom_call.1} parent=43 // pred_check
          %p603 = pneg %p109
        $region46: #{tpu_custom_call.1} parent=43 // pred_check_branch
          %605 = sbr.rel (%p603) target = $region48
        $region47: #{tpu_custom_call.1} parent=43 // pred_region
          %s606 = smul.u32 2, %s18
          %p607 = scmp.lt.s32.totalorder %s606, 3
          %s608 = scalar_select %p607, %s606, 3
          %s609 = smul.addr %s608, 8
          %s610 = scalar_lea.vmem %s3, %s609
        $region48: #{tpu_custom_call.1} parent=43 // pred_fallthru
          _
      $region44: #{tpu_custom_call.1} parent=5 // pred_fallthru
        _
    $region6: #{tpu_custom_call.1} parent=1 // loop_footer
      %s16 = sadd.s32 1, %s12
    $region7: #{tpu_custom_call.1} parent=1 // loop_footer_branch
      %11 = sbr.rel target = $region3
    $region8: #{tpu_custom_call.1} parent=1 // loop_exit
      _
    %611 = vsyncpa [#allocation3], 1
    %s612 = scalar_lea.sflag [#allocation3], 1
    %613 = vsyncpa %s612, 1

</llo_original>
